<compile_context>
chip_gen: v7x
topology: tpu7x:2x2x1
jax: 0.10.0
libtpu: 0.0.40
codegen_flags: <defaults>
</compile_context>

<pallas_src>
import jax
import jax.numpy as jnp
import numpy as np
from jax.experimental import pallas as pl
from jax.experimental.pallas import tpu as pltpu

hidden_layers = [5, 10, 15, 20, 25, 30, 35, 40, 45, 50]

_LANE = 128
_SUBLANE = 8


def _round_up(x, m):
    return ((x + m - 1) // m) * m


def _net_kernel(x_ref, w1_ref, b1_ref, w2_ref, b2_ref, o_ref):
    # Two MXU matmuls with f32 operands + f32 accumulate (exact f32 parity;
    # the kernel is memory bound, so the extra MXU passes are free), sigmoid
    # epilogue on the EUP.
    h = jnp.dot(x_ref[...], w1_ref[...], preferred_element_type=jnp.float32)
    h = jax.nn.sigmoid(h + b1_ref[...])
    out = jnp.dot(h, w2_ref[...], preferred_element_type=jnp.float32) + b2_ref[...]
    o_ref[...] = out  # lane-dense 128-wide f32 store


def pad_params(w1, b1, w2, b2):
    """Zero-pad the tiny feature dims to full 128-lane tiles.

    Do this ONCE (outside the per-call hot path) and reuse the result.
    w1: [inp, h0], b1: [1, h0] or [h0], w2: [h0, out], b2: [1, out] or [out].
    """
    inp, h0 = w1.shape
    out_units = w2.shape[1]
    h_pad = _round_up(max(h0, _LANE), _LANE)
    o_pad = _round_up(max(out_units, _LANE), _LANE)

    w1p = jnp.zeros((inp, h_pad), jnp.float32).at[:, :h0].set(
        jnp.asarray(w1, jnp.float32))
    b1p = jnp.zeros((1, h_pad), jnp.float32).at[:, :h0].set(
        jnp.asarray(b1, jnp.float32).reshape(1, h0))
    w2p = jnp.zeros((h_pad, o_pad), jnp.float32).at[:h0, :out_units].set(
        jnp.asarray(w2, jnp.float32))
    b2p = jnp.zeros((1, o_pad), jnp.float32).at[:, :out_units].set(
        jnp.asarray(b2, jnp.float32).reshape(1, out_units))
    return (w1p, b1p, w2p, b2p), out_units


def net_forward(x, padded_params, out_units, *, block_b=4096, unpad=True):
    """x: [B, inp] f32; padded_params from pad_params().

    Returns [B, out_units] (unpad=True, matches the PyTorch module) or the
    lane-padded [B, 128] slab (unpad=False, avoids an extra pass over the
    dominant output stream; read columns [:out_units]).
    """
    w1p, b1p, w2p, b2p = padded_params
    B, inp = x.shape
    h_pad = w1p.shape[1]
    o_pad = w2p.shape[1]

    # Batch tile: large enough to amortize the ~0.35 us per-grid-step overhead,
    # multiple of 8 sublanes.  If a single tile would cover the whole batch,
    # split it in two so the "parallel" axis feeds both v7x TensorCores.
    tb = min(block_b, _round_up(B, _SUBLANE))
    if B > _SUBLANE and pl.cdiv(B, tb) < 2:
        tb = _round_up(pl.cdiv(B, 2), _SUBLANE)
    grid = (pl.cdiv(B, tb),)  # ragged last block handled (masked) by Pallas

    flops = 2 * B * (inp * h_pad + h_pad * o_pad)
    bytes_accessed = 4 * (B * inp + B * o_pad
                          + inp * h_pad + h_pad * o_pad + h_pad + o_pad)
    cost = pl.CostEstimate(flops=flops, transcendentals=B * h_pad,
                           bytes_accessed=bytes_accessed)

    out = pl.pallas_call(
        _net_kernel,
        out_shape=jax.ShapeDtypeStruct((B, o_pad), jnp.float32),
        grid=grid,
        in_specs=[
            pl.BlockSpec((tb, inp), lambda i: (i, 0)),       # x: streamed per tile
            pl.BlockSpec((inp, h_pad), lambda i: (0, 0)),    # W1: VMEM-resident
            pl.BlockSpec((1, h_pad), lambda i: (0, 0)),      # b1: VMEM-resident
            pl.BlockSpec((h_pad, o_pad), lambda i: (0, 0)),  # W2: VMEM-resident
            pl.BlockSpec((1, o_pad), lambda i: (0, 0)),      # b2: VMEM-resident
        ],
        out_specs=pl.BlockSpec((tb, o_pad), lambda i: (i, 0)),
        compiler_params=pltpu.CompilerParams(
            dimension_semantics=("parallel",),               # megacore split on v7x
        ),
        cost_estimate=cost,
    )(x, w1p, b1p, w2p, b2p)

    if unpad:
        # Matches the PyTorch module's (B, out_units) output.  Perf-sensitive
        # callers should pass unpad=False and slice lazily downstream.
        return out[:, :out_units]
    return out


def init_linear_params(key, in_features, out_features):
    """Mimics torch.nn.Linear default init (uniform +-1/sqrt(in)); weight is
    returned already transposed to [in, out], bias as [1, out]."""
    kw, kb = jax.random.split(key)
    bound = 1.0 / np.sqrt(in_features)
    w = jax.random.uniform(kw, (in_features, out_features), jnp.float32,
                           minval=-bound, maxval=bound)
    b = jax.random.uniform(kb, (1, out_features), jnp.float32,
                           minval=-bound, maxval=bound)
    return w, b


if __name__ == "__main__":
    # Small shapes consistent with Net(inp_shape, hidden_layers, out_units).
    batch = 8
    inp_shape = 16
    h0 = hidden_layers[0]   # 5
    out_units = 7

    key = jax.random.PRNGKey(0)
    kx, k1, k2, kx2 = jax.random.split(key, 4)

    x = jax.random.normal(kx, (batch, inp_shape), jnp.float32)
    w1, b1 = init_linear_params(k1, inp_shape, h0)      # NET_I
    w2, b2 = init_linear_params(k2, h0, out_units)      # NET_O

    padded, n_out = pad_params(w1, b1, w2, b2)          # one-time weight prep

    out = net_forward(x, padded, n_out)
    jax.block_until_ready(out)

    # Float64 numpy reference of the exact PyTorch forward pass.
    w1_np, b1_np = np.asarray(w1, np.float64), np.asarray(b1, np.float64)
    w2_np, b2_np = np.asarray(w2, np.float64), np.asarray(b2, np.float64)

    def ref_np(xv):
        x64 = np.asarray(xv, np.float64)
        h = 1.0 / (1.0 + np.exp(-(x64 @ w1_np + b1_np)))
        return h @ w2_np + b2_np

    np.testing.assert_allclose(np.asarray(out), ref_np(x), rtol=2e-2, atol=2e-2)

    # Ragged larger batch: grid=(4,), last block of 232 rows masked by Pallas
    # (no wrapper pad pass).
    xb = jax.random.normal(kx2, (1000, inp_shape), jnp.float32)
    outb = net_forward(xb, padded, n_out, block_b=256)
    jax.block_until_ready(outb)
    np.testing.assert_allclose(np.asarray(outb), ref_np(xb), rtol=2e-2, atol=2e-2)

    # Default tiling path: single-tile batch is split into 2 parallel steps
    # (both v7x TensorCores); unpad=False returns the lane-padded slab.
    outc = net_forward(xb, padded, n_out, unpad=False)
    jax.block_until_ready(outc)
    assert outc.shape == (1000, 128)
    np.testing.assert_allclose(np.asarray(outc)[:, :n_out], ref_np(xb),
                               rtol=2e-2, atol=2e-2)

    print("KERNEL_OK")
</pallas_src>

<mosaic_0001>
module attributes {stable_mosaic.version = 11 : i64} {
  func.func @_net_kernel(%arg0: i32, %arg1: memref<8x16xf32, #tpu.memory_space<vmem>>, %arg2: memref<16x128xf32, #tpu.memory_space<vmem>>, %arg3: memref<1x128xf32, #tpu.memory_space<vmem>>, %arg4: memref<128x128xf32, #tpu.memory_space<vmem>>, %arg5: memref<1x128xf32, #tpu.memory_space<vmem>>, %arg6: memref<8x128xf32, #tpu.memory_space<vmem>>) attributes {dimension_semantics = [#tpu.dimension_semantics<parallel>], iteration_bounds = array<i64: 1>, scalar_prefetch = 0 : i64, scratch_operands = 0 : i64, tpu.core_type = #tpu.core_type<tc>, window_params = [{transform_indices = @transform_0, window_bounds = array<i64: 8, 16>}, {pipeline_mode = #tpu.pipeline_mode<synchronous>, transform_indices = @transform_1, window_bounds = array<i64: 16, 128>}, {pipeline_mode = #tpu.pipeline_mode<synchronous>, transform_indices = @transform_2, window_bounds = array<i64: 1, 128>}, {pipeline_mode = #tpu.pipeline_mode<synchronous>, transform_indices = @transform_3, window_bounds = array<i64: 128, 128>}, {pipeline_mode = #tpu.pipeline_mode<synchronous>, transform_indices = @transform_4, window_bounds = array<i64: 1, 128>}, {transform_indices = @transform_5, window_bounds = array<i64: 8, 128>}]} {
    %c0 = arith.constant 0 : index
    %c0_0 = arith.constant 0 : index
    %0 = vector.load %arg1[%c0, %c0_0] : memref<8x16xf32, #tpu.memory_space<vmem>>, vector<8x16xf32>
    %c0_1 = arith.constant 0 : index
    %c0_2 = arith.constant 0 : index
    %1 = vector.load %arg2[%c0_1, %c0_2] : memref<16x128xf32, #tpu.memory_space<vmem>>, vector<16x128xf32>
    %cst = arith.constant dense<0.000000e+00> : vector<8x128xf32>
    %2 = tpu.matmul %0, %1, %cst {dimension_numbers = #tpu.dot_dimension_numbers<[1], [0], [0], [1], [0, 0, 1, 1], [], []>} : vector<8x16xf32>, vector<16x128xf32>, vector<8x128xf32> -> vector<8x128xf32>
    %c0_3 = arith.constant 0 : index
    %c0_4 = arith.constant 0 : index
    %3 = vector.load %arg3[%c0_3, %c0_4] : memref<1x128xf32, #tpu.memory_space<vmem>>, vector<1x128xf32>
    %4 = vector.broadcast %3 : vector<1x128xf32> to vector<8x128xf32>
    %5 = arith.addf %2, %4 : vector<8x128xf32>
    %6 = arith.negf %5 : vector<8x128xf32>
    %7 = math.exp %6 : vector<8x128xf32>
    %cst_5 = arith.constant 1.000000e+00 : f32
    %8 = vector.broadcast %cst_5 : f32 to vector<8x128xf32>
    %9 = arith.addf %8, %7 : vector<8x128xf32>
    %10 = arith.divf %8, %9 : vector<8x128xf32>
    %c0_6 = arith.constant 0 : index
    %c0_7 = arith.constant 0 : index
    %11 = vector.load %arg4[%c0_6, %c0_7] : memref<128x128xf32, #tpu.memory_space<vmem>>, vector<128x128xf32>
    %cst_8 = arith.constant dense<0.000000e+00> : vector<8x128xf32>
    %12 = tpu.matmul %10, %11, %cst_8 {dimension_numbers = #tpu.dot_dimension_numbers<[1], [0], [0], [1], [0, 0, 1, 1], [], []>} : vector<8x128xf32>, vector<128x128xf32>, vector<8x128xf32> -> vector<8x128xf32>
    %c0_9 = arith.constant 0 : index
    %c0_10 = arith.constant 0 : index
    %13 = vector.load %arg5[%c0_9, %c0_10] : memref<1x128xf32, #tpu.memory_space<vmem>>, vector<1x128xf32>
    %14 = vector.broadcast %13 : vector<1x128xf32> to vector<8x128xf32>
    %15 = arith.addf %12, %14 : vector<8x128xf32>
    %c0_11 = arith.constant 0 : index
    %c0_12 = arith.constant 0 : index
    %16 = vector.load %arg6[%c0_11, %c0_12] : memref<8x128xf32, #tpu.memory_space<vmem>>, vector<8x128xf32>
    tpu.vector_store %arg6[%c0_11, %c0_12], %15 {strides = array<i32>} : memref<8x128xf32, #tpu.memory_space<vmem>>, vector<8x128xf32>,
    return
  }
  func.func @transform_0(%arg0: i32) -> (i32, i32) {
    %c0_i32 = arith.constant 0 : i32
    %c0_i32_0 = arith.constant 0 : i32
    return %arg0, %c0_i32 : i32, i32
  }
  func.func @transform_1(%arg0: i32) -> (i32, i32) {
    %c0_i32 = arith.constant 0 : i32
    %c0_i32_0 = arith.constant 0 : i32
    %c0_i32_1 = arith.constant 0 : i32
    return %c0_i32, %c0_i32_0 : i32, i32
  }
  func.func @transform_2(%arg0: i32) -> (i32, i32) {
    %c0_i32 = arith.constant 0 : i32
    %c0_i32_0 = arith.constant 0 : i32
    %c0_i32_1 = arith.constant 0 : i32
    return %c0_i32, %c0_i32_0 : i32, i32
  }
  func.func @transform_3(%arg0: i32) -> (i32, i32) {
    %c0_i32 = arith.constant 0 : i32
    %c0_i32_0 = arith.constant 0 : i32
    %c0_i32_1 = arith.constant 0 : i32
    return %c0_i32, %c0_i32_0 : i32, i32
  }
  func.func @transform_4(%arg0: i32) -> (i32, i32) {
    %c0_i32 = arith.constant 0 : i32
    %c0_i32_0 = arith.constant 0 : i32
    %c0_i32_1 = arith.constant 0 : i32
    return %c0_i32, %c0_i32_0 : i32, i32
  }
  func.func @transform_5(%arg0: i32) -> (i32, i32) {
    %c0_i32 = arith.constant 0 : i32
    %c0_i32_0 = arith.constant 0 : i32
    return %arg0, %c0_i32 : i32, i32
  }
}

</mosaic_0001>

<llo_original>
// kernel: tpu_custom_call.1
$region0: #{tpu_custom_call.1}
  #allocation0 [shape = 'u32[]', space=smem, size = 0x4, offset = 0x4, fixed_abs, tag = 'smem constant byte address 0x4 - core index']
  #allocation1 [shape = 'u32[144,128]{1,0:T(1,128)}', space=vmem, size = 0x12000, scoped, tag = 'internal scratch']
  %s0 = inlined_call_operand.hbm [shape: f32[8,16], index: 0, kind: input, shape index: {}]
  %s1 = inlined_call_operand.hbm [shape: f32[16,128], index: 1, kind: input, shape index: {}]
  %s2 = inlined_call_operand.vmem [shape: f32[1,128], index: 2, kind: input, shape index: {}]
  %s3 = inlined_call_operand.hbm [shape: f32[128,128], index: 3, kind: input, shape index: {}]
  %s4 = inlined_call_operand.vmem [shape: f32[1,128], index: 4, kind: input, shape index: {}]
  %s5 = inlined_call_operand.hbm [shape: f32[8,128], index: 5, kind: output, shape index: {}]
  %s6 = sld [smem:[#allocation0]]
  $region42: #{tpu_custom_call.1} parent=0
    _
  %s8 = ssub.s32 1, %s6
  %s9 = scalar_select 0, %s8, %s6
  $region1: #{tpu_custom_call.1} parent=0
    #allocation2 [shape = 'u8[4096]{0}', space=vmem, size = 0x1000, scoped, tag = 'input window, operand 0, single buffered']
    #allocation3 [shape = 's32[1]{0}', space=sflag, size = 0x4, scoped, tag = 'scoped memory for tpu_custom_call.1']
    #allocation4 [shape = 's32[1]{0}', space=sflag, size = 0x4, scoped, tag = 'scoped memory for tpu_custom_call.1']
    #allocation5 [shape = 'u8[8192]{0}', space=vmem, size = 0x2000, scoped, tag = 'input window, operand 1, single buffered']
    #allocation6 [shape = 's32[1]{0}', space=sflag, size = 0x4, scoped, tag = 'scoped memory for tpu_custom_call.1']
    #allocation7 [shape = 'u8[65536]{0}', space=vmem, size = 0x10000, scoped, tag = 'input window, operand 3, single buffered']
    #allocation8 [shape = 'u8[4096]{0}', space=vmem, size = 0x1000, scoped, tag = 'output window, operand 0, single buffered']
    %10 = vsyncpa [#allocation3], 0
    %11 = vsyncpa [#allocation6], 0
    %12 = vsyncpa [#allocation4], 0
    // Predicated region
    $region2: #{tpu_custom_call.1} parent=1 // pred_check
      _
    $region3: #{tpu_custom_call.1} parent=1 // pred_check_branch
      %14 = sbr.rel (0) target = $region5
    $region4: #{tpu_custom_call.1} parent=1 // pred_region
      %s16 = ssub.s32 128, 128
      %17 = vsyncadd [#allocation3], %s16
      %s19 = sshll.u32 [#allocation2], 4
      %s20 = int_to_ptr.vmem [resolvable:$true] %s19
      %22 = dma.hbm_to_vmem [thread:$0]  %s0, 128, %s20, [#allocation3]
    $region5: #{tpu_custom_call.1} parent=1 // pred_fallthru
      _
    // Predicated region
    $region6: #{tpu_custom_call.1} parent=1 // pred_check
      _
    $region7: #{tpu_custom_call.1} parent=1 // pred_check_branch
      %24 = sbr.rel (0) target = $region9
    $region8: #{tpu_custom_call.1} parent=1 // pred_region
      %s26 = ssub.s32 256, 256
      %27 = vsyncadd [#allocation6], %s26
      %s28 = sshll.u32 [#allocation5], 4
      %s29 = int_to_ptr.vmem [resolvable:$true] %s28
      %34 = dma.hbm_to_vmem [thread:$0]  %s1, 256, %s29, [#allocation6], 128, 128, 8
    $region9: #{tpu_custom_call.1} parent=1 // pred_fallthru
      _
    // Predicated region
    $region10: #{tpu_custom_call.1} parent=1 // pred_check
      _
    $region11: #{tpu_custom_call.1} parent=1 // pred_check_branch
      %36 = sbr.rel (0) target = $region13
    $region12: #{tpu_custom_call.1} parent=1 // pred_region
      _
    $region13: #{tpu_custom_call.1} parent=1 // pred_fallthru
      _
    // Predicated region
    $region14: #{tpu_custom_call.1} parent=1 // pred_check
      _
    $region15: #{tpu_custom_call.1} parent=1 // pred_check_branch
      %38 = sbr.rel (0) target = $region17
    $region16: #{tpu_custom_call.1} parent=1 // pred_region
      %s40 = ssub.s32 2048, 2048
      %41 = vsyncadd [#allocation6], %s40
      %s42 = sshll.u32 [#allocation7], 4
      %s43 = int_to_ptr.vmem [resolvable:$true] %s42
      %48 = dma.hbm_to_vmem [thread:$0]  %s3, 2048, %s43, [#allocation6], 128, 128, 8
    $region17: #{tpu_custom_call.1} parent=1 // pred_fallthru
      _
    // Predicated region
    $region18: #{tpu_custom_call.1} parent=1 // pred_check
      _
    $region19: #{tpu_custom_call.1} parent=1 // pred_check_branch
      %50 = sbr.rel (0) target = $region21
    $region20: #{tpu_custom_call.1} parent=1 // pred_region
      _
    $region21: #{tpu_custom_call.1} parent=1 // pred_fallthru
      _
    // Predicated region
    $region22: #{tpu_custom_call.1} parent=1 // pred_check
      _
    $region23: #{tpu_custom_call.1} parent=1 // pred_check_branch
      %52 = sbr.rel (0) target = $region25
    $region24: #{tpu_custom_call.1} parent=1 // pred_region
      %53 = dma.done [#allocation3], 128
    $region25: #{tpu_custom_call.1} parent=1 // pred_fallthru
      _
    // Predicated region
    $region26: #{tpu_custom_call.1} parent=1 // pred_check
      _
    $region27: #{tpu_custom_call.1} parent=1 // pred_check_branch
      %55 = sbr.rel (0) target = $region29
    $region28: #{tpu_custom_call.1} parent=1 // pred_region
      %56 = dma.done [#allocation6], 256
    $region29: #{tpu_custom_call.1} parent=1 // pred_fallthru
      _
    // Predicated region
    $region30: #{tpu_custom_call.1} parent=1 // pred_check
      _
    $region31: #{tpu_custom_call.1} parent=1 // pred_check_branch
      %58 = sbr.rel (0) target = $region33
    $region32: #{tpu_custom_call.1} parent=1 // pred_region
      %59 = dma.done [#allocation6], 2048
    $region33: #{tpu_custom_call.1} parent=1 // pred_fallthru
      _
    %v60 = vld [vmem:[#allocation2] sm:$0xff]
    %v61 = vld [vmem:[#allocation5] sm:$0xff]
    %v62 = vld [vmem:[#allocation5 + $0x8] sm:$0xff]
    %v63 = vld [vmem:[%s2] sm:$0x1]
    %v65 = vlaneseq
    %v66 = vshrl.u32 %v65, 7
    %v67 = vsub.s32 0, %v66
    %v68 = vrot.slane %v63, %v67
    %vm70 = vcmask 130048
    %v72 = vsel %vm70, %v60, 0
    %74 = vmatprep.subr.mxu0 0.0
    %75 = vmatpush1.msra.mxu0 %v61
    %76 = vmatprep.subr.mxu0 0.0
    %77 = vmatpush1.msra.mxu0 %v62
    %78 = vmatprep.subr.mxu0 0.0
    %79 = vmatpush1.msra.mxu0 0.0
    %80 = vmatprep.subr.mxu0 0.0
    %81 = vmatpush1.msra.mxu0 0.0
    %82 = vmatprep.subr.mxu0 0.0
    %83 = vmatpush1.msra.mxu0 0.0
    %84 = vmatprep.subr.mxu0 0.0
    %85 = vmatpush1.msra.mxu0 0.0
    %86 = vmatprep.subr.mxu0 0.0
    %87 = vmatpush1.msra.mxu0 0.0
    %88 = vmatprep.subr.mxu0 0.0
    %89 = vmatpush1.msra.mxu0 0.0
    %90 = vmatprep.subr.mxu0 0.0
    %91 = vmatpush1.msra.mxu0 0.0
    %92 = vmatprep.subr.mxu0 0.0
    %93 = vmatpush1.msra.mxu0 0.0
    %94 = vmatprep.subr.mxu0 0.0
    %95 = vmatpush1.msra.mxu0 0.0
    %96 = vmatprep.subr.mxu0 0.0
    %97 = vmatpush1.msra.mxu0 0.0
    %98 = vmatprep.subr.mxu0 0.0
    %99 = vmatpush1.msra.mxu0 0.0
    %100 = vmatprep.subr.mxu0 0.0
    %101 = vmatpush1.msra.mxu0 0.0
    %102 = vmatprep.subr.mxu0 0.0
    %103 = vmatpush1.msra.mxu0 0.0
    %104 = vmatprep.subr.mxu0 0.0
    %105 = vmatpush1.msra.mxu0 0.0
    %106 = vmatprep.subr.mxu0 0.0
    %107 = vmatpush1.msra.mxu0 0.0
    %108 = vmatprep.subr.mxu0 0.0
    %109 = vmatpush1.msra.mxu0 0.0
    %110 = vmatprep.subr.mxu0 0.0
    %111 = vmatpush1.msra.mxu0 0.0
    %112 = vmatprep.subr.mxu0 0.0
    %113 = vmatpush1.msra.mxu0 0.0
    %114 = vmatprep.subr.mxu0 0.0
    %115 = vmatpush1.msra.mxu0 0.0
    %116 = vmatprep.subr.mxu0 0.0
    %117 = vmatpush1.msra.mxu0 0.0
    %118 = vmatprep.subr.mxu0 0.0
    %119 = vmatpush1.msra.mxu0 0.0
    %120 = vmatprep.subr.mxu0 0.0
    %121 = vmatpush1.msra.mxu0 0.0
    %122 = vmatprep.subr.mxu0 0.0
    %123 = vmatpush1.msra.mxu0 0.0
    %124 = vmatprep.subr.mxu0 0.0
    %125 = vmatpush1.msra.mxu0 0.0
    %126 = vmatprep.subr.mxu0 0.0
    %127 = vmatpush1.msra.mxu0 0.0
    %128 = vmatprep.subr.mxu0 0.0
    %129 = vmatpush1.msra.mxu0 0.0
    %130 = vmatprep.subr.mxu0 0.0
    %131 = vmatpush1.msra.mxu0 0.0
    %132 = vmatprep.subr.mxu0 0.0
    %133 = vmatpush1.msra.mxu0 0.0
    %134 = vmatprep.subr.mxu0 0.0
    %135 = vmatpush1.msra.mxu0 0.0
    %136 = vmatprep.subr.mxu0 0.0
    %137 = vmatpush1.msra.mxu0 0.0
    %138 = vmatprep.mubr.f32.mxu0 0.0
    %139 = vmatmul.mubr.f32.gmra.mrb[0].mxu0 %v72
    %v140 = vpop.f32.mrb[0].mxu0
    %v141 = vadd.f32 %v68, %v140
    %v142 = vpop.f32.mrb[0].mxu0
    %143 = vdwg.mxu0
    %v144 = vxor.u32 %v141, 2147483648
    %v145 = vmul.f32 %v144, 1.442695
    %v146 = vpow.pop %v145
    %v147 = vadd.f32 %v146, 1.0
    %v148 = vrcp.pop %v147
    %v149 = vmul.f32 1.0, %v148
    %v150 = vld [vmem:[#allocation7] sm:$0xff]
    %v151 = vld [vmem:[#allocation7 + $0x8] sm:$0xff]
    %v152 = vld [vmem:[#allocation7 + $0x10] sm:$0xff]
    %v153 = vld [vmem:[#allocation7 + $0x18] sm:$0xff]
    %v154 = vld [vmem:[#allocation7 + $0x20] sm:$0xff]
    %v155 = vld [vmem:[#allocation7 + $0x28] sm:$0xff]
    %v156 = vld [vmem:[#allocation7 + $0x30] sm:$0xff]
    %v157 = vld [vmem:[#allocation7 + $0x38] sm:$0xff]
    %v158 = vld [vmem:[#allocation7 + $0x40] sm:$0xff]
    %v159 = vld [vmem:[#allocation7 + $0x48] sm:$0xff]
    %v160 = vld [vmem:[#allocation7 + $0x50] sm:$0xff]
    %v161 = vld [vmem:[#allocation7 + $0x58] sm:$0xff]
    %v162 = vld [vmem:[#allocation7 + $0x60] sm:$0xff]
    %v163 = vld [vmem:[#allocation7 + $0x68] sm:$0xff]
    %v164 = vld [vmem:[#allocation7 + $0x70] sm:$0xff]
    %v165 = vld [vmem:[#allocation7 + $0x78] sm:$0xff]
    %v166 = vld [vmem:[%s4] sm:$0x1]
    %v168 = vlaneseq
    %v169 = vshrl.u32 %v168, 7
    %v170 = vsub.s32 0, %v169
    %v171 = vrot.slane %v166, %v170
    %173 = vmatprep.subr.mxu0 0.0
    %174 = vmatpush1.msra.mxu0 %v150
    %175 = vmatprep.subr.mxu0 0.0
    %176 = vmatpush1.msra.mxu0 %v151
    %177 = vmatprep.subr.mxu0 0.0
    %178 = vmatpush1.msra.mxu0 %v152
    %179 = vmatprep.subr.mxu0 0.0
    %180 = vmatpush1.msra.mxu0 %v153
    %181 = vmatprep.subr.mxu0 0.0
    %182 = vmatpush1.msra.mxu0 %v154
    %183 = vmatprep.subr.mxu0 0.0
    %184 = vmatpush1.msra.mxu0 %v155
    %185 = vmatprep.subr.mxu0 0.0
    %186 = vmatpush1.msra.mxu0 %v156
    %187 = vmatprep.subr.mxu0 0.0
    %188 = vmatpush1.msra.mxu0 %v157
    %189 = vmatprep.subr.mxu0 0.0
    %190 = vmatpush1.msra.mxu0 %v158
    %191 = vmatprep.subr.mxu0 0.0
    %192 = vmatpush1.msra.mxu0 %v159
    %193 = vmatprep.subr.mxu0 0.0
    %194 = vmatpush1.msra.mxu0 %v160
    %195 = vmatprep.subr.mxu0 0.0
    %196 = vmatpush1.msra.mxu0 %v161
    %197 = vmatprep.subr.mxu0 0.0
    %198 = vmatpush1.msra.mxu0 %v162
    %199 = vmatprep.subr.mxu0 0.0
    %200 = vmatpush1.msra.mxu0 %v163
    %201 = vmatprep.subr.mxu0 0.0
    %202 = vmatpush1.msra.mxu0 %v164
    %203 = vmatprep.subr.mxu0 0.0
    %204 = vmatpush1.msra.mxu0 %v165
    %205 = vmatprep.subr.mxu0 0.0
    %206 = vmatpush1.msra.mxu0 0.0
    %207 = vmatprep.subr.mxu0 0.0
    %208 = vmatpush1.msra.mxu0 0.0
    %209 = vmatprep.subr.mxu0 0.0
    %210 = vmatpush1.msra.mxu0 0.0
    %211 = vmatprep.subr.mxu0 0.0
    %212 = vmatpush1.msra.mxu0 0.0
    %213 = vmatprep.subr.mxu0 0.0
    %214 = vmatpush1.msra.mxu0 0.0
    %215 = vmatprep.subr.mxu0 0.0
    %216 = vmatpush1.msra.mxu0 0.0
    %217 = vmatprep.subr.mxu0 0.0
    %218 = vmatpush1.msra.mxu0 0.0
    %219 = vmatprep.subr.mxu0 0.0
    %220 = vmatpush1.msra.mxu0 0.0
    %221 = vmatprep.subr.mxu0 0.0
    %222 = vmatpush1.msra.mxu0 0.0
    %223 = vmatprep.subr.mxu0 0.0
    %224 = vmatpush1.msra.mxu0 0.0
    %225 = vmatprep.subr.mxu0 0.0
    %226 = vmatpush1.msra.mxu0 0.0
    %227 = vmatprep.subr.mxu0 0.0
    %228 = vmatpush1.msra.mxu0 0.0
    %229 = vmatprep.subr.mxu0 0.0
    %230 = vmatpush1.msra.mxu0 0.0
    %231 = vmatprep.subr.mxu0 0.0
    %232 = vmatpush1.msra.mxu0 0.0
    %233 = vmatprep.subr.mxu0 0.0
    %234 = vmatpush1.msra.mxu0 0.0
    %235 = vmatprep.subr.mxu0 0.0
    %236 = vmatpush1.msra.mxu0 0.0
    %237 = vmatprep.mubr.f32.mxu0 0.0
    %238 = vmatmul.mubr.f32.gmra.mrb[0].mxu0 %v149
    %v239 = vpop.f32.mrb[0].mxu0
    %v240 = vadd.f32 %v171, %v239
    %v241 = vpop.f32.mrb[0].mxu0
    %242 = vdwg.mxu0
    %243 = vst [vmem:[#allocation8] sm:$0xff] %v240
    // Predicated region
    $region34: #{tpu_custom_call.1} parent=1 // pred_check
      _
    $region35: #{tpu_custom_call.1} parent=1 // pred_check_branch
      %245 = sbr.rel (0) target = $region37
    $region36: #{tpu_custom_call.1} parent=1 // pred_region
      %s247 = ssub.s32 128, 128
      %248 = vsyncadd [#allocation4], %s247
      %s250 = sshll.u32 [#allocation8], 4
      %s251 = int_to_ptr.vmem [resolvable:$true] %s250
      %253 = dma.vmem_to_hbm [thread:$0]  %s251, 128, %s5, [#allocation4]
    $region37: #{tpu_custom_call.1} parent=1 // pred_fallthru
      _
    // Predicated region
    $region38: #{tpu_custom_call.1} parent=1 // pred_check
      _
    $region39: #{tpu_custom_call.1} parent=1 // pred_check_branch
      %255 = sbr.rel (0) target = $region41
    $region40: #{tpu_custom_call.1} parent=1 // pred_region
      %256 = dma.done [#allocation4], 128
    $region41: #{tpu_custom_call.1} parent=1 // pred_fallthru
      _
    %257 = vsyncpa [#allocation3], 1
    %258 = vsyncpa [#allocation6], 1
    %259 = vsyncpa [#allocation4], 1

</llo_original>
